<compile_context>
chip_gen: v7x
topology: tpu7x:2x2x1
jax: 0.10.0
libtpu: 0.0.40
codegen_flags: <defaults>
</compile_context>

<pallas_src>
import functools
import math

import jax
import jax.numpy as jnp
from jax.experimental import pallas as pl
from jax.experimental.pallas import tpu as pltpu

NEG_SLOPE = 0.01
D_IN, D_H1, D_H2, D_OUT = 210, 100, 50, 10
# Lane-aligned (padded) dims.
P_IN, P_H1, P_H2, P_OUT = 256, 128, 128, 128
NEG_MASK = -1e30  # finite "minus infinity" baked into the padded class-lane biases


def _round_up(n, m):
    return ((n + m - 1) // m) * m


def _leaky_relu(x):
    return jnp.where(x > 0, x, NEG_SLOPE * x)


def mlp_kernel(x_ref, w1_ref, b1_ref, w2_ref, b2_ref, w3_ref, b3_ref, o_ref):
    """Fused forward for one (tb, 256) batch tile -> (tb, 128) padded bf16 probs."""
    x = x_ref[...]  # (tb, 256) bf16; padded feature lanes are zero.

    # fc_layer1: Linear(210,100) + LeakyReLU   (Dropout = identity in eval)
    h1 = jnp.dot(x, w1_ref[...], preferred_element_type=jnp.float32) + b1_ref[...]
    h1 = _leaky_relu(h1).astype(jnp.bfloat16)          # padded lanes stay exactly 0

    # fc_layer2: Linear(100,50) + LeakyReLU    (Dropout = identity in eval)
    h2 = jnp.dot(h1, w2_ref[...], preferred_element_type=jnp.float32) + b2_ref[...]
    h2 = _leaky_relu(h2).astype(jnp.bfloat16)

    # fc_layer3: Linear(50,10) + Softmax(dim=1).  Padded class lanes already carry
    # a -1e30 bias (and zero weight columns), so exp() drives them to 0 exactly.
    logits = jnp.dot(h2, w3_ref[...], preferred_element_type=jnp.float32) + b3_ref[...]
    m = jnp.max(logits, axis=1, keepdims=True)
    e = jnp.exp(logits - m)
    denom = jnp.sum(e, axis=1, keepdims=True)
    o_ref[...] = (e / denom).astype(o_ref.dtype)       # exact divide: rows sum to ~1


def _pad_params(params):
    """Zero-pad weights/biases to lane-aligned shapes; weights cast to bf16.

    b3's padded class lanes get a large finite negative value so the softmax mask
    is free (no in-kernel iota/where) and no inf/NaN can propagate.
    """
    w1, b1, w2, b2, w3, b3 = params
    w1p = jnp.zeros((P_IN, P_H1), jnp.bfloat16).at[:D_IN, :D_H1].set(w1.astype(jnp.bfloat16))
    w2p = jnp.zeros((P_H1, P_H2), jnp.bfloat16).at[:D_H1, :D_H2].set(w2.astype(jnp.bfloat16))
    w3p = jnp.zeros((P_H2, P_OUT), jnp.bfloat16).at[:D_H2, :D_OUT].set(w3.astype(jnp.bfloat16))
    b1p = jnp.zeros((1, P_H1), jnp.float32).at[:, :D_H1].set(b1.astype(jnp.float32))
    b2p = jnp.zeros((1, P_H2), jnp.float32).at[:, :D_H2].set(b2.astype(jnp.float32))
    b3p = jnp.full((1, P_OUT), NEG_MASK, jnp.float32).at[:, :D_OUT].set(b3.astype(jnp.float32))
    return w1p, b1p, w2p, b2p, w3p, b3p


def _pick_tile(B, tb):
    """Batch tile: multiple of 8, <= padded batch, <= 4096 (VMEM headroom).

    Core-count aware: if a single tile would cover the whole (padded) batch but
    there is room for >=2 tiles, halve it so the 'parallel' grid axis has >=2
    steps and both v7x TensorCores participate.
    """
    bp8 = _round_up(max(B, 1), 8)
    tile = max(8, min(_round_up(tb, 8), bp8, 4096))
    if bp8 >= 16 and tile >= bp8:
        tile = max(8, _round_up(math.ceil(B / 2), 8))
    return tile


@functools.partial(jax.jit, static_argnames=("tb",))
def number_detector_forward(x, params, tb=1024):
    """x: any shape whose elements reshape to (-1, 210), matching x.view(-1, 210)."""
    x2d = jnp.reshape(x, (-1, D_IN))
    B = x2d.shape[0]

    tile = _pick_tile(B, tb)
    Bp = _round_up(B, tile)

    # Single fused pad+cast pass (lax.pad) to the lane-dense bf16 layout.
    xp = jnp.pad(x2d.astype(jnp.bfloat16), ((0, Bp - B), (0, P_IN - D_IN)))
    w1p, b1p, w2p, b2p, w3p, b3p = _pad_params(params)

    full = lambda i: (0, 0)  # weights/biases resident every step (~100 KiB total)

    out_padded = pl.pallas_call(
        mlp_kernel,
        out_shape=jax.ShapeDtypeStruct((Bp, P_OUT), jnp.bfloat16),  # halve write traffic
        grid_spec=pltpu.PrefetchScalarGridSpec(
            num_scalar_prefetch=0,
            grid=(Bp // tile,),
            in_specs=[
                pl.BlockSpec((tile, P_IN), lambda i: (i, 0)),
                pl.BlockSpec((P_IN, P_H1), full),
                pl.BlockSpec((1, P_H1), full),
                pl.BlockSpec((P_H1, P_H2), full),
                pl.BlockSpec((1, P_H2), full),
                pl.BlockSpec((P_H2, P_OUT), full),
                pl.BlockSpec((1, P_OUT), full),
            ],
            out_specs=pl.BlockSpec((tile, P_OUT), lambda i: (i, 0)),
        ),
        compiler_params=pltpu.CompilerParams(
            dimension_semantics=("parallel",),
            # Explicit scoped-VMEM budget so large tiles stay safe on v5e (16 MiB
            # default) without exceeding v7x's 64 MiB physical VMEM.
            vmem_limit_bytes=32 * 1024 * 1024,
        ),
    )(xp, w1p, b1p, w2p, b2p, w3p, b3p)

    # Strip batch padding (skipped when already aligned) and the padded class lanes.
    out = out_padded[:, :D_OUT] if Bp == B else out_padded[:B, :D_OUT]
    # Upcast the tiny (B, 10) result to match the module's f32 output dtype.
    return out.astype(jnp.float32)


def init_params(key):
    """Deterministic init mirroring nn.Linear's default (uniform +-1/sqrt(fan_in))."""
    ks = jax.random.split(key, 6)

    def lin(kw, kb, fan_in, fan_out):
        bound = 1.0 / jnp.sqrt(jnp.float32(fan_in))
        w = jax.random.uniform(kw, (fan_in, fan_out), jnp.float32, -bound, bound)
        b = jax.random.uniform(kb, (1, fan_out), jnp.float32, -bound, bound)
        return w, b

    w1, b1 = lin(ks[0], ks[1], D_IN, D_H1)
    w2, b2 = lin(ks[2], ks[3], D_H1, D_H2)
    w3, b3 = lin(ks[4], ks[5], D_H2, D_OUT)
    return (w1, b1, w2, b2, w3, b3)


def reference_forward(x, params):
    """Pure-JAX f32 reference (eval-mode semantics, identity dropout)."""
    w1, b1, w2, b2, w3, b3 = params
    h = jnp.reshape(x, (-1, D_IN)).astype(jnp.float32)
    h = _leaky_relu(h @ w1 + b1)
    h = _leaky_relu(h @ w2 + b2)
    logits = h @ w3 + b3
    return jax.nn.softmax(logits, axis=1)


if __name__ == "__main__":
    key = jax.random.PRNGKey(0)
    k_x, k_p = jax.random.split(key)

    # Small input consistent with x.view(-1, 210): (8, 210)
    x = jax.random.normal(k_x, (8, D_IN), dtype=jnp.float32)
    params = init_params(k_p)

    out = number_detector_forward(x, params)
    out = jax.block_until_ready(out)

    ref = reference_forward(x, params)
    assert out.shape == (8, D_OUT)
    # bf16 matmuls + bf16-stored probabilities => loosened tolerance vs f32 reference.
    assert jnp.allclose(out, ref, atol=3e-2, rtol=0), "mismatch vs reference"
    # rows of softmax should sum to ~1 (exact divide; only bf16 storage rounding left)
    assert jnp.allclose(jnp.sum(out, axis=1), jnp.ones((8,)), atol=1e-2)

    print("KERNEL_OK")
</pallas_src>

<mosaic_0001>
module attributes {stable_mosaic.version = 11 : i64} {
  func.func @mlp_kernel(%arg0: i32, %arg1: memref<8x256xbf16, #tpu.memory_space<vmem>>, %arg2: memref<256x128xbf16, #tpu.memory_space<vmem>>, %arg3: memref<1x128xf32, #tpu.memory_space<vmem>>, %arg4: memref<128x128xbf16, #tpu.memory_space<vmem>>, %arg5: memref<1x128xf32, #tpu.memory_space<vmem>>, %arg6: memref<128x128xbf16, #tpu.memory_space<vmem>>, %arg7: memref<1x128xf32, #tpu.memory_space<vmem>>, %arg8: memref<8x128xbf16, #tpu.memory_space<vmem>>) attributes {dimension_semantics = [#tpu.dimension_semantics<parallel>], iteration_bounds = array<i64: 1>, scalar_prefetch = 0 : i64, scratch_operands = 0 : i64, tpu.core_type = #tpu.core_type<tc>, window_params = [{transform_indices = @transform_0, window_bounds = array<i64: 8, 256>}, {pipeline_mode = #tpu.pipeline_mode<synchronous>, transform_indices = @transform_1, window_bounds = array<i64: 256, 128>}, {pipeline_mode = #tpu.pipeline_mode<synchronous>, transform_indices = @transform_2, window_bounds = array<i64: 1, 128>}, {pipeline_mode = #tpu.pipeline_mode<synchronous>, transform_indices = @transform_3, window_bounds = array<i64: 128, 128>}, {pipeline_mode = #tpu.pipeline_mode<synchronous>, transform_indices = @transform_4, window_bounds = array<i64: 1, 128>}, {pipeline_mode = #tpu.pipeline_mode<synchronous>, transform_indices = @transform_5, window_bounds = array<i64: 128, 128>}, {pipeline_mode = #tpu.pipeline_mode<synchronous>, transform_indices = @transform_6, window_bounds = array<i64: 1, 128>}, {transform_indices = @transform_7, window_bounds = array<i64: 8, 128>}]} {
    %c0 = arith.constant 0 : index
    %c0_0 = arith.constant 0 : index
    %0 = vector.load %arg1[%c0, %c0_0] : memref<8x256xbf16, #tpu.memory_space<vmem>>, vector<8x256xbf16>
    %c0_1 = arith.constant 0 : index
    %c0_2 = arith.constant 0 : index
    %1 = vector.load %arg2[%c0_1, %c0_2] : memref<256x128xbf16, #tpu.memory_space<vmem>>, vector<256x128xbf16>
    %cst = arith.constant dense<0.000000e+00> : vector<8x128xf32>
    %2 = tpu.matmul %0, %1, %cst {dimension_numbers = #tpu.dot_dimension_numbers<[1], [0], [0], [1], [0, 0, 1, 1], [], []>} : vector<8x256xbf16>, vector<256x128xbf16>, vector<8x128xf32> -> vector<8x128xf32>
    %c0_3 = arith.constant 0 : index
    %c0_4 = arith.constant 0 : index
    %3 = vector.load %arg3[%c0_3, %c0_4] : memref<1x128xf32, #tpu.memory_space<vmem>>, vector<1x128xf32>
    %4 = vector.broadcast %3 : vector<1x128xf32> to vector<8x128xf32>
    %5 = arith.addf %2, %4 : vector<8x128xf32>
    %cst_5 = arith.constant 0.000000e+00 : f32
    %6 = vector.broadcast %cst_5 : f32 to vector<8x128xf32>
    %7 = arith.cmpf ogt, %5, %6 : vector<8x128xf32>
    %cst_6 = arith.constant 0.00999999977 : f32
    %8 = vector.broadcast %cst_6 : f32 to vector<8x128xf32>
    %9 = arith.mulf %8, %5 : vector<8x128xf32>
    %10 = arith.select %7, %5, %9 : vector<8x128xi1>, vector<8x128xf32>
    %11 = arith.truncf %10 : vector<8x128xf32> to vector<8x128xbf16>
    %c0_7 = arith.constant 0 : index
    %c0_8 = arith.constant 0 : index
    %12 = vector.load %arg4[%c0_7, %c0_8] : memref<128x128xbf16, #tpu.memory_space<vmem>>, vector<128x128xbf16>
    %cst_9 = arith.constant dense<0.000000e+00> : vector<8x128xf32>
    %13 = tpu.matmul %11, %12, %cst_9 {dimension_numbers = #tpu.dot_dimension_numbers<[1], [0], [0], [1], [0, 0, 1, 1], [], []>} : vector<8x128xbf16>, vector<128x128xbf16>, vector<8x128xf32> -> vector<8x128xf32>
    %c0_10 = arith.constant 0 : index
    %c0_11 = arith.constant 0 : index
    %14 = vector.load %arg5[%c0_10, %c0_11] : memref<1x128xf32, #tpu.memory_space<vmem>>, vector<1x128xf32>
    %15 = vector.broadcast %14 : vector<1x128xf32> to vector<8x128xf32>
    %16 = arith.addf %13, %15 : vector<8x128xf32>
    %cst_12 = arith.constant 0.000000e+00 : f32
    %17 = vector.broadcast %cst_12 : f32 to vector<8x128xf32>
    %18 = arith.cmpf ogt, %16, %17 : vector<8x128xf32>
    %cst_13 = arith.constant 0.00999999977 : f32
    %19 = vector.broadcast %cst_13 : f32 to vector<8x128xf32>
    %20 = arith.mulf %19, %16 : vector<8x128xf32>
    %21 = arith.select %18, %16, %20 : vector<8x128xi1>, vector<8x128xf32>
    %22 = arith.truncf %21 : vector<8x128xf32> to vector<8x128xbf16>
    %c0_14 = arith.constant 0 : index
    %c0_15 = arith.constant 0 : index
    %23 = vector.load %arg6[%c0_14, %c0_15] : memref<128x128xbf16, #tpu.memory_space<vmem>>, vector<128x128xbf16>
    %cst_16 = arith.constant dense<0.000000e+00> : vector<8x128xf32>
    %24 = tpu.matmul %22, %23, %cst_16 {dimension_numbers = #tpu.dot_dimension_numbers<[1], [0], [0], [1], [0, 0, 1, 1], [], []>} : vector<8x128xbf16>, vector<128x128xbf16>, vector<8x128xf32> -> vector<8x128xf32>
    %c0_17 = arith.constant 0 : index
    %c0_18 = arith.constant 0 : index
    %25 = vector.load %arg7[%c0_17, %c0_18] : memref<1x128xf32, #tpu.memory_space<vmem>>, vector<1x128xf32>
    %26 = vector.broadcast %25 : vector<1x128xf32> to vector<8x128xf32>
    %27 = arith.addf %24, %26 : vector<8x128xf32>
    %cst_19 = arith.constant dense<0xFF800000> : vector<8xf32>
    %28 = vector.multi_reduction <maximumf>, %27, %cst_19 [1] : vector<8x128xf32> to vector<8xf32>
    %29 = vector.shape_cast %28 : vector<8xf32> to vector<8x1xf32>
    %30 = vector.broadcast %29 : vector<8x1xf32> to vector<8x128xf32>
    %31 = arith.subf %27, %30 : vector<8x128xf32>
    %32 = math.exp %31 : vector<8x128xf32>
    %cst_20 = arith.constant dense<0.000000e+00> : vector<8xf32>
    %33 = vector.multi_reduction <add>, %32, %cst_20 [1] : vector<8x128xf32> to vector<8xf32>
    %34 = vector.shape_cast %33 : vector<8xf32> to vector<8x1xf32>
    %35 = vector.broadcast %34 : vector<8x1xf32> to vector<8x128xf32>
    %36 = arith.divf %32, %35 : vector<8x128xf32>
    %37 = arith.truncf %36 : vector<8x128xf32> to vector<8x128xbf16>
    %c0_21 = arith.constant 0 : index
    %c0_22 = arith.constant 0 : index
    %38 = vector.load %arg8[%c0_21, %c0_22] : memref<8x128xbf16, #tpu.memory_space<vmem>>, vector<8x128xbf16>
    tpu.vector_store %arg8[%c0_21, %c0_22], %37 {strides = array<i32>} : memref<8x128xbf16, #tpu.memory_space<vmem>>, vector<8x128xbf16>,
    return
  }
  func.func @transform_0(%arg0: i32) -> (i32, i32) {
    %c0_i32 = arith.constant 0 : i32
    %c0_i32_0 = arith.constant 0 : i32
    return %arg0, %c0_i32 : i32, i32
  }
  func.func @transform_1(%arg0: i32) -> (i32, i32) {
    %c0_i32 = arith.constant 0 : i32
    %c0_i32_0 = arith.constant 0 : i32
    %c0_i32_1 = arith.constant 0 : i32
    return %c0_i32, %c0_i32_0 : i32, i32
  }
  func.func @transform_2(%arg0: i32) -> (i32, i32) {
    %c0_i32 = arith.constant 0 : i32
    %c0_i32_0 = arith.constant 0 : i32
    %c0_i32_1 = arith.constant 0 : i32
    return %c0_i32, %c0_i32_0 : i32, i32
  }
  func.func @transform_3(%arg0: i32) -> (i32, i32) {
    %c0_i32 = arith.constant 0 : i32
    %c0_i32_0 = arith.constant 0 : i32
    %c0_i32_1 = arith.constant 0 : i32
    return %c0_i32, %c0_i32_0 : i32, i32
  }
  func.func @transform_4(%arg0: i32) -> (i32, i32) {
    %c0_i32 = arith.constant 0 : i32
    %c0_i32_0 = arith.constant 0 : i32
    %c0_i32_1 = arith.constant 0 : i32
    return %c0_i32, %c0_i32_0 : i32, i32
  }
  func.func @transform_5(%arg0: i32) -> (i32, i32) {
    %c0_i32 = arith.constant 0 : i32
    %c0_i32_0 = arith.constant 0 : i32
    %c0_i32_1 = arith.constant 0 : i32
    return %c0_i32, %c0_i32_0 : i32, i32
  }
  func.func @transform_6(%arg0: i32) -> (i32, i32) {
    %c0_i32 = arith.constant 0 : i32
    %c0_i32_0 = arith.constant 0 : i32
    %c0_i32_1 = arith.constant 0 : i32
    return %c0_i32, %c0_i32_0 : i32, i32
  }
  func.func @transform_7(%arg0: i32) -> (i32, i32) {
    %c0_i32 = arith.constant 0 : i32
    %c0_i32_0 = arith.constant 0 : i32
    return %arg0, %c0_i32 : i32, i32
  }
}

</mosaic_0001>

<llo_original>
// kernel: number_detector_forward.1
$region0: #{number_detector_forward.1}
  #allocation0 [shape = 'u32[]', space=smem, size = 0x4, offset = 0x4, fixed_abs, tag = 'smem constant byte address 0x4 - core index']
  #allocation1 [shape = 'u32[144,128]{1,0:T(1,128)}', space=vmem, size = 0x12000, scoped, tag = 'internal scratch']
  %s0 = inlined_call_operand.vmem [shape: bf16[8,256], index: 0, kind: input, shape index: {}]
  %s1 = inlined_call_operand.vmem [shape: bf16[256,128], index: 1, kind: input, shape index: {}]
  %s2 = inlined_call_operand.vmem [shape: f32[1,128], index: 2, kind: input, shape index: {}]
  %s3 = inlined_call_operand.vmem [shape: bf16[128,128], index: 3, kind: input, shape index: {}]
  %s4 = inlined_call_operand.vmem [shape: f32[1,128], index: 4, kind: input, shape index: {}]
  %s5 = inlined_call_operand.vmem [shape: bf16[128,128], index: 5, kind: input, shape index: {}]
  %s6 = inlined_call_operand.vmem [shape: f32[1,128], index: 6, kind: input, shape index: {}]
  %s7 = inlined_call_operand.vmem [shape: bf16[8,128], index: 7, kind: output, shape index: {}]
  %s8 = sld [smem:[#allocation0]]
  $region38: #{number_detector_forward.1} parent=0
    _
  %s10 = ssub.s32 1, %s8
  %s11 = scalar_select 0, %s10, %s8
  // Predicated region
  $region2: #{number_detector_forward.1} parent=0 // pred_check
    _
  $region3: #{number_detector_forward.1} parent=0 // pred_check_branch
    %13 = sbr.rel (0) target = $region5
  $region4: #{number_detector_forward.1} parent=0 // pred_region
    _
  $region5: #{number_detector_forward.1} parent=0 // pred_fallthru
    _
  // Predicated region
  $region6: #{number_detector_forward.1} parent=0 // pred_check
    _
  $region7: #{number_detector_forward.1} parent=0 // pred_check_branch
    %15 = sbr.rel (0) target = $region9
  $region8: #{number_detector_forward.1} parent=0 // pred_region
    _
  $region9: #{number_detector_forward.1} parent=0 // pred_fallthru
    _
  // Predicated region
  $region10: #{number_detector_forward.1} parent=0 // pred_check
    _
  $region11: #{number_detector_forward.1} parent=0 // pred_check_branch
    %17 = sbr.rel (0) target = $region13
  $region12: #{number_detector_forward.1} parent=0 // pred_region
    _
  $region13: #{number_detector_forward.1} parent=0 // pred_fallthru
    _
  // Predicated region
  $region14: #{number_detector_forward.1} parent=0 // pred_check
    _
  $region15: #{number_detector_forward.1} parent=0 // pred_check_branch
    %19 = sbr.rel (0) target = $region17
  $region16: #{number_detector_forward.1} parent=0 // pred_region
    _
  $region17: #{number_detector_forward.1} parent=0 // pred_fallthru
    _
  // Predicated region
  $region18: #{number_detector_forward.1} parent=0 // pred_check
    _
  $region19: #{number_detector_forward.1} parent=0 // pred_check_branch
    %21 = sbr.rel (0) target = $region21
  $region20: #{number_detector_forward.1} parent=0 // pred_region
    _
  $region21: #{number_detector_forward.1} parent=0 // pred_fallthru
    _
  // Predicated region
  $region22: #{number_detector_forward.1} parent=0 // pred_check
    _
  $region23: #{number_detector_forward.1} parent=0 // pred_check_branch
    %23 = sbr.rel (0) target = $region25
  $region24: #{number_detector_forward.1} parent=0 // pred_region
    _
  $region25: #{number_detector_forward.1} parent=0 // pred_fallthru
    _
  // Predicated region
  $region26: #{number_detector_forward.1} parent=0 // pred_check
    _
  $region27: #{number_detector_forward.1} parent=0 // pred_check_branch
    %25 = sbr.rel (0) target = $region29
  $region28: #{number_detector_forward.1} parent=0 // pred_region
    _
  $region29: #{number_detector_forward.1} parent=0 // pred_fallthru
    _
  %v27 = vld [vmem:[%s0] sm:$0xff]
  %v28 = vld [vmem:[%s1] sm:$0xf]
  %v29 = vld [vmem:[%s1 + $0x4] sm:$0xf]
  %v30 = vld [vmem:[%s1 + $0x8] sm:$0xf]
  %v31 = vld [vmem:[%s1 + $0xc] sm:$0xf]
  %v32 = vld [vmem:[%s1 + $0x10] sm:$0xf]
  %v33 = vld [vmem:[%s1 + $0x14] sm:$0xf]
  %v34 = vld [vmem:[%s1 + $0x18] sm:$0xf]
  %v35 = vld [vmem:[%s1 + $0x1c] sm:$0xf]
  %v36 = vld [vmem:[%s1 + $0x20] sm:$0xf]
  %v37 = vld [vmem:[%s1 + $0x24] sm:$0xf]
  %v38 = vld [vmem:[%s1 + $0x28] sm:$0xf]
  %v39 = vld [vmem:[%s1 + $0x2c] sm:$0xf]
  %v40 = vld [vmem:[%s1 + $0x30] sm:$0xf]
  %v41 = vld [vmem:[%s1 + $0x34] sm:$0xf]
  %v42 = vld [vmem:[%s1 + $0x38] sm:$0xf]
  %v43 = vld [vmem:[%s1 + $0x3c] sm:$0xf]
  %v44 = vld [vmem:[%s1 + $0x40] sm:$0xf]
  %v45 = vld [vmem:[%s1 + $0x44] sm:$0xf]
  %v46 = vld [vmem:[%s1 + $0x48] sm:$0xf]
  %v47 = vld [vmem:[%s1 + $0x4c] sm:$0xf]
  %v48 = vld [vmem:[%s1 + $0x50] sm:$0xf]
  %v49 = vld [vmem:[%s1 + $0x54] sm:$0xf]
  %v50 = vld [vmem:[%s1 + $0x58] sm:$0xf]
  %v51 = vld [vmem:[%s1 + $0x5c] sm:$0xf]
  %v52 = vld [vmem:[%s1 + $0x60] sm:$0xf]
  %v53 = vld [vmem:[%s1 + $0x64] sm:$0xf]
  %v54 = vld [vmem:[%s1 + $0x68] sm:$0xf]
  %v55 = vld [vmem:[%s1 + $0x6c] sm:$0xf]
  %v56 = vld [vmem:[%s1 + $0x70] sm:$0xf]
  %v57 = vld [vmem:[%s1 + $0x74] sm:$0xf]
  %v58 = vld [vmem:[%s1 + $0x78] sm:$0xf]
  %v59 = vld [vmem:[%s1 + $0x7c] sm:$0xf]
  %v60 = vld [vmem:[%s2] sm:$0x1]
  %v62 = vlaneseq
  %v63 = vshrl.u32 %v62, 7
  %v64 = vsub.s32 0, %v63
  %v65 = vrot.slane %v60, %v64
  %v68 = vunpack.c.l.b16 %v27
  %v69 = vunpack.c.h.b16 %v27
  %v70 = vpack.c.b16 %v68, %v68
  %v71 = vpack.c.b16 %v69, %v69
  %v106 = vunpack.c.l.b16 %v28
  %v107 = vunpack.c.l.b16 %v29
  %v108 = vunpack.c.l.b16 %v30
  %v109 = vunpack.c.l.b16 %v31
  %v110 = vunpack.c.l.b16 %v32
  %v111 = vunpack.c.l.b16 %v33
  %v112 = vunpack.c.l.b16 %v34
  %v113 = vunpack.c.l.b16 %v35
  %v114 = vunpack.c.l.b16 %v36
  %v115 = vunpack.c.l.b16 %v37
  %v116 = vunpack.c.l.b16 %v38
  %v117 = vunpack.c.l.b16 %v39
  %v118 = vunpack.c.l.b16 %v40
  %v119 = vunpack.c.l.b16 %v41
  %v120 = vunpack.c.l.b16 %v42
  %v121 = vunpack.c.l.b16 %v43
  %v122 = vunpack.c.l.b16 %v44
  %v123 = vunpack.c.l.b16 %v45
  %v124 = vunpack.c.l.b16 %v46
  %v125 = vunpack.c.l.b16 %v47
  %v126 = vunpack.c.l.b16 %v48
  %v127 = vunpack.c.l.b16 %v49
  %v128 = vunpack.c.l.b16 %v50
  %v129 = vunpack.c.l.b16 %v51
  %v130 = vunpack.c.l.b16 %v52
  %v131 = vunpack.c.l.b16 %v53
  %v132 = vunpack.c.l.b16 %v54
  %v133 = vunpack.c.l.b16 %v55
  %v134 = vunpack.c.l.b16 %v56
  %v135 = vunpack.c.l.b16 %v57
  %v136 = vunpack.c.l.b16 %v58
  %v137 = vunpack.c.l.b16 %v59
  %v138 = vpack.c.b16 %v107, %v106
  %v139 = vpack.c.b16 %v109, %v108
  %v140 = vpack.c.b16 %v111, %v110
  %v141 = vpack.c.b16 %v113, %v112
  %v142 = vpack.c.b16 %v115, %v114
  %v143 = vpack.c.b16 %v117, %v116
  %v144 = vpack.c.b16 %v119, %v118
  %v145 = vpack.c.b16 %v121, %v120
  %v146 = vpack.c.b16 %v123, %v122
  %v147 = vpack.c.b16 %v125, %v124
  %v148 = vpack.c.b16 %v127, %v126
  %v149 = vpack.c.b16 %v129, %v128
  %v150 = vpack.c.b16 %v131, %v130
  %v151 = vpack.c.b16 %v133, %v132
  %v152 = vpack.c.b16 %v135, %v134
  %v153 = vpack.c.b16 %v137, %v136
  %170 = vmatprep.subr.bf16.mxu0 0
  %171 = vmatpush1.bf16.msra.mxu0 %v138
  %172 = vmatprep.subr.bf16.mxu0 0
  %173 = vmatpush1.bf16.msra.mxu0 %v139
  %174 = vmatprep.subr.bf16.mxu0 0
  %175 = vmatpush1.bf16.msra.mxu0 %v140
  %176 = vmatprep.subr.bf16.mxu0 0
  %177 = vmatpush1.bf16.msra.mxu0 %v141
  %178 = vmatprep.subr.bf16.mxu0 0
  %179 = vmatpush1.bf16.msra.mxu0 %v142
  %180 = vmatprep.subr.bf16.mxu0 0
  %181 = vmatpush1.bf16.msra.mxu0 %v143
  %182 = vmatprep.subr.bf16.mxu0 0
  %183 = vmatpush1.bf16.msra.mxu0 %v144
  %184 = vmatprep.subr.bf16.mxu0 0
  %185 = vmatpush1.bf16.msra.mxu0 %v145
  %186 = vmatprep.subr.bf16.mxu0 0
  %187 = vmatpush1.bf16.msra.mxu0 %v146
  %188 = vmatprep.subr.bf16.mxu0 0
  %189 = vmatpush1.bf16.msra.mxu0 %v147
  %190 = vmatprep.subr.bf16.mxu0 0
  %191 = vmatpush1.bf16.msra.mxu0 %v148
  %192 = vmatprep.subr.bf16.mxu0 0
  %193 = vmatpush1.bf16.msra.mxu0 %v149
  %194 = vmatprep.subr.bf16.mxu0 0
  %195 = vmatpush1.bf16.msra.mxu0 %v150
  %196 = vmatprep.subr.bf16.mxu0 0
  %197 = vmatpush1.bf16.msra.mxu0 %v151
  %198 = vmatprep.subr.bf16.mxu0 0
  %199 = vmatpush1.bf16.msra.mxu0 %v152
  %200 = vmatprep.subr.bf16.mxu0 0
  %201 = vmatpush1.bf16.msra.mxu0 %v153
  %202 = vmatprep.mubr.bf16.mxu0 %v71
  %203 = vmatmul.mubr.bf16.gmra.mrb[0].mxu0 %v70
  %v204 = vpop.f32.mrb[0].mxu0
  %v205 = vadd.f32 %v65, %v204
  %v206 = vpop.f32.mrb[0].mxu0
  %v207 = vpop.f32.mrb[0].mxu0
  %v208 = vpop.f32.mrb[0].mxu0
  %209 = vdwg.mxu0
  %vm210 = vcmp.gt.f32.partialorder %v205, 0.0
  %v211 = vmul.f32 %v205, 0.01
  %v212 = vsel %vm210, %v205, %v211
  %v213 = vpack.c.bf16 %v212, %v212
  %v214 = vld [vmem:[%s3] sm:$0xf]
  %v215 = vld [vmem:[%s3 + $0x4] sm:$0xf]
  %v216 = vld [vmem:[%s3 + $0x8] sm:$0xf]
  %v217 = vld [vmem:[%s3 + $0xc] sm:$0xf]
  %v218 = vld [vmem:[%s3 + $0x10] sm:$0xf]
  %v219 = vld [vmem:[%s3 + $0x14] sm:$0xf]
  %v220 = vld [vmem:[%s3 + $0x18] sm:$0xf]
  %v221 = vld [vmem:[%s3 + $0x1c] sm:$0xf]
  %v222 = vld [vmem:[%s3 + $0x20] sm:$0xf]
  %v223 = vld [vmem:[%s3 + $0x24] sm:$0xf]
  %v224 = vld [vmem:[%s3 + $0x28] sm:$0xf]
  %v225 = vld [vmem:[%s3 + $0x2c] sm:$0xf]
  %v226 = vld [vmem:[%s3 + $0x30] sm:$0xf]
  %v227 = vld [vmem:[%s3 + $0x34] sm:$0xf]
  %v228 = vld [vmem:[%s3 + $0x38] sm:$0xf]
  %v229 = vld [vmem:[%s3 + $0x3c] sm:$0xf]
  %v230 = vld [vmem:[%s4] sm:$0x1]
  %v232 = vlaneseq
  %v233 = vshrl.u32 %v232, 7
  %v234 = vsub.s32 0, %v233
  %v235 = vrot.slane %v230, %v234
  %v253 = vunpack.c.l.b16 %v214
  %v254 = vunpack.c.l.b16 %v215
  %v255 = vunpack.c.l.b16 %v216
  %v256 = vunpack.c.l.b16 %v217
  %v257 = vunpack.c.l.b16 %v218
  %v258 = vunpack.c.l.b16 %v219
  %v259 = vunpack.c.l.b16 %v220
  %v260 = vunpack.c.l.b16 %v221
  %v261 = vunpack.c.l.b16 %v222
  %v262 = vunpack.c.l.b16 %v223
  %v263 = vunpack.c.l.b16 %v224
  %v264 = vunpack.c.l.b16 %v225
  %v265 = vunpack.c.l.b16 %v226
  %v266 = vunpack.c.l.b16 %v227
  %v267 = vunpack.c.l.b16 %v228
  %v268 = vunpack.c.l.b16 %v229
  %v269 = vpack.c.b16 %v254, %v253
  %v270 = vpack.c.b16 %v256, %v255
  %v271 = vpack.c.b16 %v258, %v257
  %v272 = vpack.c.b16 %v260, %v259
  %v273 = vpack.c.b16 %v262, %v261
  %v274 = vpack.c.b16 %v264, %v263
  %v275 = vpack.c.b16 %v266, %v265
  %v276 = vpack.c.b16 %v268, %v267
  %285 = vmatprep.subr.bf16.mxu0 0
  %286 = vmatpush1.bf16.msra.mxu0 %v269
  %287 = vmatprep.subr.bf16.mxu0 0
  %288 = vmatpush1.bf16.msra.mxu0 %v270
  %289 = vmatprep.subr.bf16.mxu0 0
  %290 = vmatpush1.bf16.msra.mxu0 %v271
  %291 = vmatprep.subr.bf16.mxu0 0
  %292 = vmatpush1.bf16.msra.mxu0 %v272
  %293 = vmatprep.subr.bf16.mxu0 0
  %294 = vmatpush1.bf16.msra.mxu0 %v273
  %295 = vmatprep.subr.bf16.mxu0 0
  %296 = vmatpush1.bf16.msra.mxu0 %v274
  %297 = vmatprep.subr.bf16.mxu0 0
  %298 = vmatpush1.bf16.msra.mxu0 %v275
  %299 = vmatprep.subr.bf16.mxu0 0
  %300 = vmatpush1.bf16.msra.mxu0 %v276
  %301 = vmatprep.subr.bf16.mxu0 0
  %302 = vmatpush1.bf16.msra.mxu0 0
  %303 = vmatprep.subr.bf16.mxu0 0
  %304 = vmatpush1.bf16.msra.mxu0 0
  %305 = vmatprep.subr.bf16.mxu0 0
  %306 = vmatpush1.bf16.msra.mxu0 0
  %307 = vmatprep.subr.bf16.mxu0 0
  %308 = vmatpush1.bf16.msra.mxu0 0
  %309 = vmatprep.subr.bf16.mxu0 0
  %310 = vmatpush1.bf16.msra.mxu0 0
  %311 = vmatprep.subr.bf16.mxu0 0
  %312 = vmatpush1.bf16.msra.mxu0 0
  %313 = vmatprep.subr.bf16.mxu0 0
  %314 = vmatpush1.bf16.msra.mxu0 0
  %315 = vmatprep.subr.bf16.mxu0 0
  %316 = vmatpush1.bf16.msra.mxu0 0
  %317 = vmatprep.mubr.bf16.mxu0 0
  %318 = vmatmul.mubr.bf16.gmra.mrb[0].mxu0 %v213
  %v319 = vpop.f32.mrb[0].mxu0
  %v320 = vadd.f32 %v235, %v319
  %v321 = vpop.f32.mrb[0].mxu0
  %v322 = vpop.f32.mrb[0].mxu0
  %v323 = vpop.f32.mrb[0].mxu0
  %324 = vdwg.mxu0
  %vm325 = vcmp.gt.f32.partialorder %v320, 0.0
  %v326 = vmul.f32 %v320, 0.01
  %v327 = vsel %vm325, %v320, %v326
  %v328 = vpack.c.bf16 %v327, %v327
  %v329 = vld [vmem:[%s5] sm:$0xf]
  %v330 = vld [vmem:[%s5 + $0x4] sm:$0xf]
  %v331 = vld [vmem:[%s5 + $0x8] sm:$0xf]
  %v332 = vld [vmem:[%s5 + $0xc] sm:$0xf]
  %v333 = vld [vmem:[%s5 + $0x10] sm:$0xf]
  %v334 = vld [vmem:[%s5 + $0x14] sm:$0xf]
  %v335 = vld [vmem:[%s5 + $0x18] sm:$0xf]
  %v336 = vld [vmem:[%s5 + $0x1c] sm:$0xf]
  %v337 = vld [vmem:[%s5 + $0x20] sm:$0xf]
  %v338 = vld [vmem:[%s5 + $0x24] sm:$0xf]
  %v339 = vld [vmem:[%s5 + $0x28] sm:$0xf]
  %v340 = vld [vmem:[%s5 + $0x2c] sm:$0xf]
  %v341 = vld [vmem:[%s5 + $0x30] sm:$0xf]
  %v342 = vld [vmem:[%s5 + $0x34] sm:$0xf]
  %v343 = vld [vmem:[%s5 + $0x38] sm:$0xf]
  %v344 = vld [vmem:[%s5 + $0x3c] sm:$0xf]
  %v345 = vld [vmem:[%s6] sm:$0x1]
  %v347 = vlaneseq
  %v348 = vshrl.u32 %v347, 7
  %v349 = vsub.s32 0, %v348
  %v350 = vrot.slane %v345, %v349
  %v368 = vunpack.c.l.b16 %v329
  %v369 = vunpack.c.l.b16 %v330
  %v370 = vunpack.c.l.b16 %v331
  %v371 = vunpack.c.l.b16 %v332
  %v372 = vunpack.c.l.b16 %v333
  %v373 = vunpack.c.l.b16 %v334
  %v374 = vunpack.c.l.b16 %v335
  %v375 = vunpack.c.l.b16 %v336
  %v376 = vunpack.c.l.b16 %v337
  %v377 = vunpack.c.l.b16 %v338
  %v378 = vunpack.c.l.b16 %v339
  %v379 = vunpack.c.l.b16 %v340
  %v380 = vunpack.c.l.b16 %v341
  %v381 = vunpack.c.l.b16 %v342
  %v382 = vunpack.c.l.b16 %v343
  %v383 = vunpack.c.l.b16 %v344
  %v384 = vpack.c.b16 %v369, %v368
  %v385 = vpack.c.b16 %v371, %v370
  %v386 = vpack.c.b16 %v373, %v372
  %v387 = vpack.c.b16 %v375, %v374
  %v388 = vpack.c.b16 %v377, %v376
  %v389 = vpack.c.b16 %v379, %v378
  %v390 = vpack.c.b16 %v381, %v380
  %v391 = vpack.c.b16 %v383, %v382
  %400 = vmatprep.subr.bf16.mxu0 0
  %401 = vmatpush1.bf16.msra.mxu0 %v384
  %402 = vmatprep.subr.bf16.mxu0 0
  %403 = vmatpush1.bf16.msra.mxu0 %v385
  %404 = vmatprep.subr.bf16.mxu0 0
  %405 = vmatpush1.bf16.msra.mxu0 %v386
  %406 = vmatprep.subr.bf16.mxu0 0
  %407 = vmatpush1.bf16.msra.mxu0 %v387
  %408 = vmatprep.subr.bf16.mxu0 0
  %409 = vmatpush1.bf16.msra.mxu0 %v388
  %410 = vmatprep.subr.bf16.mxu0 0
  %411 = vmatpush1.bf16.msra.mxu0 %v389
  %412 = vmatprep.subr.bf16.mxu0 0
  %413 = vmatpush1.bf16.msra.mxu0 %v390
  %414 = vmatprep.subr.bf16.mxu0 0
  %415 = vmatpush1.bf16.msra.mxu0 %v391
  %416 = vmatprep.subr.bf16.mxu0 0
  %417 = vmatpush1.bf16.msra.mxu0 0
  %418 = vmatprep.subr.bf16.mxu0 0
  %419 = vmatpush1.bf16.msra.mxu0 0
  %420 = vmatprep.subr.bf16.mxu0 0
  %421 = vmatpush1.bf16.msra.mxu0 0
  %422 = vmatprep.subr.bf16.mxu0 0
  %423 = vmatpush1.bf16.msra.mxu0 0
  %424 = vmatprep.subr.bf16.mxu0 0
  %425 = vmatpush1.bf16.msra.mxu0 0
  %426 = vmatprep.subr.bf16.mxu0 0
  %427 = vmatpush1.bf16.msra.mxu0 0
  %428 = vmatprep.subr.bf16.mxu0 0
  %429 = vmatpush1.bf16.msra.mxu0 0
  %430 = vmatprep.subr.bf16.mxu0 0
  %431 = vmatpush1.bf16.msra.mxu0 0
  %432 = vmatprep.mubr.bf16.mxu0 0
  %433 = vmatmul.mubr.bf16.gmra.mrb[0].mxu0 %v328
  %v434 = vpop.f32.mrb[0].mxu0
  %v435 = vadd.f32 %v350, %v434
  %v436 = vpop.f32.mrb[0].mxu0
  %v437 = vpop.f32.mrb[0].mxu0
  %v438 = vpop.f32.mrb[0].mxu0
  %439 = vdwg.mxu0
  %440 = vmax.xlane.f32.xlu0 %v435
  %v441 = vpop.xlane.xlu0 %440
  %v442 = vsub.f32 %v435, %v441
  %v443 = vmul.f32 %v442, 1.442695
  %v444 = vpow.pop %v443
  %445 = vadd.xlane.f32.xlu0 %v444
  %v446 = vpop.xlane.xlu0 %445
  %v447 = vrcp.pop %v446
  %v448 = vmul.f32 %v444, %v447
  %v449 = vpack.c.bf16 %v448, %v448
  %450 = vst [vmem:[%s7] sm:$0xf] %v449
  // Predicated region
  $region30: #{number_detector_forward.1} parent=0 // pred_check
    _
  $region31: #{number_detector_forward.1} parent=0 // pred_check_branch
    %452 = sbr.rel (0) target = $region33
  $region32: #{number_detector_forward.1} parent=0 // pred_region
    _
  $region33: #{number_detector_forward.1} parent=0 // pred_fallthru
    _
  // Predicated region
  $region34: #{number_detector_forward.1} parent=0 // pred_check
    _
  $region35: #{number_detector_forward.1} parent=0 // pred_check_branch
    %454 = sbr.rel (0) target = $region37
  $region36: #{number_detector_forward.1} parent=0 // pred_region
    _
  $region37: #{number_detector_forward.1} parent=0 // pred_fallthru
    _

</llo_original>
